<compile_context>
chip_gen: v7x
topology: tpu7x:2x2x1
jax: 0.10.0
libtpu: 0.0.40
codegen_flags: <defaults>
</compile_context>

<pallas_src>
import jax
import jax.numpy as jnp
from jax.experimental import pallas as pl
from jax.experimental.pallas import tpu as pltpu


def dynamics_mlp_kernel(x_ref, w1_ref, b1_ref, w2_ref, b2_ref, w3_ref, b3_ref, o_ref):
    # bf16 MXU matmuls with f32 accumulation; bias add + ReLU in f32 on the VPU.
    x = x_ref[...].astype(jnp.bfloat16)
    h1 = jnp.dot(x, w1_ref[...], preferred_element_type=jnp.float32)
    h1 = jnp.maximum(h1 + b1_ref[...], 0.0)
    h2 = jnp.dot(h1.astype(jnp.bfloat16), w2_ref[...], preferred_element_type=jnp.float32)
    h2 = jnp.maximum(h2 + b2_ref[...], 0.0)
    out = jnp.dot(h2.astype(jnp.bfloat16), w3_ref[...], preferred_element_type=jnp.float32)
    o_ref[...] = (out + b3_ref[...]).astype(o_ref.dtype)


def _round_up(v, m):
    return ((v + m - 1) // m) * m


def prepare_params(params):
    """One-time prep: pad hidden/output feature dims to 128 lanes (exact:
    padded K contributes 0, padded bias cols are 0, ReLU(0)=0) and cast the
    MXU weight operands to bf16.  Biases stay f32."""
    w1, b1, w2, b2, w3, b3 = params
    hidden = w1.shape[1]
    obs_dim = w3.shape[1]
    hid_p = _round_up(hidden, 128)
    out_p = _round_up(obs_dim, 128)

    w1p = jnp.pad(w1, ((0, 0), (0, hid_p - hidden))).astype(jnp.bfloat16)
    b1p = jnp.pad(b1, ((0, 0), (0, hid_p - hidden)))
    w2p = jnp.pad(w2, ((0, hid_p - hidden), (0, hid_p - hidden))).astype(jnp.bfloat16)
    b2p = jnp.pad(b2, ((0, 0), (0, hid_p - hidden)))
    w3p = jnp.pad(w3, ((0, hid_p - hidden), (0, out_p - obs_dim))).astype(jnp.bfloat16)
    b3p = jnp.pad(b3, ((0, 0), (0, out_p - obs_dim)))
    return (w1p, b1p, w2p, b2p, w3p, b3p)


def dynamics_net_forward(x, prepared, obs_dim, *, tm=4096):
    """x: (B, obs_dim + act_dim) float32. Returns (B, obs_dim) float32."""
    w1p, b1p, w2p, b2p, w3p, b3p = prepared
    B, in_dim = x.shape
    hid_p = w1p.shape[1]
    out_p = w3p.shape[1]

    # Batch tile: multiple of 8 sublanes, capped at `tm` (default 4096 keeps
    # the working set well under 32 MiB scoped VMEM on every generation).
    TM = min(tm, _round_up(B, 8))
    grid = (pl.cdiv(B, TM),)  # ragged last tile handled by Pallas (no batch pad)

    def const_spec(a):
        return pl.BlockSpec(a.shape, lambda i: (0, 0))

    # Cost estimate uses the true (un-padded) layer-1 K and bf16 weight bytes.
    flops = 2 * B * (in_dim * hid_p + hid_p * hid_p + hid_p * out_p)
    bytes_accessed = (
        4 * B * in_dim                                            # x read (f32)
        + 4 * B * out_p                                           # out write (f32)
        + 2 * (in_dim * hid_p + hid_p * hid_p + hid_p * out_p)    # bf16 weights
        + 4 * (2 * hid_p + out_p)                                 # f32 biases
    )

    out_padded = pl.pallas_call(
        dynamics_mlp_kernel,
        out_shape=jax.ShapeDtypeStruct((B, out_p), x.dtype),
        grid=grid,
        in_specs=[
            pl.BlockSpec((TM, in_dim), lambda i: (i, 0)),  # true K for layer 1
            const_spec(w1p), const_spec(b1p),
            const_spec(w2p), const_spec(b2p),
            const_spec(w3p), const_spec(b3p),
        ],
        out_specs=pl.BlockSpec((TM, out_p), lambda i: (i, 0)),
        compiler_params=pltpu.CompilerParams(
            dimension_semantics=("parallel",),
            vmem_limit_bytes=32 * 1024 * 1024,
        ),
        cost_estimate=pl.CostEstimate(
            flops=flops, transcendentals=0, bytes_accessed=bytes_accessed
        ),
    )(x, w1p, b1p, w2p, b2p, w3p, b3p)

    # Only the lane (feature) padding needs slicing off; batch dim is exact.
    return out_padded[:, :obs_dim]


def init_params(key, obs_dim, act_dim, hidden):
    """Deterministic init mimicking PyTorch Linear default (uniform +-1/sqrt(fan_in))."""
    in_dim = obs_dim + act_dim
    ks = jax.random.split(key, 6)

    def lin(kw, kb, fan_in, fan_out):
        lim = 1.0 / jnp.sqrt(jnp.float32(fan_in))
        w = jax.random.uniform(kw, (fan_in, fan_out), jnp.float32, -lim, lim)
        b = jax.random.uniform(kb, (1, fan_out), jnp.float32, -lim, lim)
        return w, b

    w1, b1 = lin(ks[0], ks[1], in_dim, hidden)
    w2, b2 = lin(ks[2], ks[3], hidden, hidden)
    w3, b3 = lin(ks[4], ks[5], hidden, obs_dim)
    return (w1, b1, w2, b2, w3, b3)


def reference_forward_f32(x, params):
    w1, b1, w2, b2, w3, b3 = params
    h1 = jnp.maximum(x @ w1 + b1, 0.0)
    h2 = jnp.maximum(h1 @ w2 + b2, 0.0)
    return h2 @ w3 + b3


def reference_forward_bf16(x, params):
    # Same bf16-operand / f32-accumulation recipe as the kernel.
    w1, b1, w2, b2, w3, b3 = params
    bf = jnp.bfloat16
    h1 = jnp.maximum(
        jnp.dot(x.astype(bf), w1.astype(bf), preferred_element_type=jnp.float32) + b1, 0.0)
    h2 = jnp.maximum(
        jnp.dot(h1.astype(bf), w2.astype(bf), preferred_element_type=jnp.float32) + b2, 0.0)
    return jnp.dot(h2.astype(bf), w3.astype(bf), preferred_element_type=jnp.float32) + b3


if __name__ == "__main__":
    # Small shapes consistent with the module (hidden=128 is the PyTorch default).
    obs_dim, act_dim, hidden = 16, 8, 128
    batch = 32

    key = jax.random.PRNGKey(0)
    k_params, k_x = jax.random.split(key)
    params = init_params(k_params, obs_dim, act_dim, hidden)
    prepared = prepare_params(params)

    x = jax.random.normal(k_x, (batch, obs_dim + act_dim), jnp.float32)

    out = dynamics_net_forward(x, prepared, obs_dim)
    out = jax.block_until_ready(out)

    ref_bf16 = reference_forward_bf16(x, params)
    ref_f32 = reference_forward_f32(x, params)

    assert out.shape == (batch, obs_dim)
    assert jnp.allclose(out, ref_bf16, atol=1e-3, rtol=1e-3)  # matches bf16/f32-acc recipe
    assert jnp.allclose(out, ref_f32, atol=5e-2, rtol=5e-2)   # close to full-f32 reference

    # Also exercise the ragged-last-tile path (B not a multiple of TM).
    x_ragged = jax.random.normal(jax.random.PRNGKey(1), (20, obs_dim + act_dim), jnp.float32)
    out_ragged = jax.block_until_ready(dynamics_net_forward(x_ragged, prepared, obs_dim, tm=8))
    assert jnp.allclose(out_ragged, reference_forward_bf16(x_ragged, params), atol=1e-3, rtol=1e-3)

    print("KERNEL_OK")
</pallas_src>

<mosaic_0001>
module attributes {stable_mosaic.version = 11 : i64} {
  func.func @dynamics_mlp_kernel(%arg0: i32, %arg1: memref<32x24xf32, #tpu.memory_space<vmem>>, %arg2: memref<24x128xbf16, #tpu.memory_space<vmem>>, %arg3: memref<1x128xf32, #tpu.memory_space<vmem>>, %arg4: memref<128x128xbf16, #tpu.memory_space<vmem>>, %arg5: memref<1x128xf32, #tpu.memory_space<vmem>>, %arg6: memref<128x128xbf16, #tpu.memory_space<vmem>>, %arg7: memref<1x128xf32, #tpu.memory_space<vmem>>, %arg8: memref<32x128xf32, #tpu.memory_space<vmem>>) attributes {dimension_semantics = [#tpu.dimension_semantics<parallel>], iteration_bounds = array<i64: 1>, scalar_prefetch = 0 : i64, scratch_operands = 0 : i64, tpu.core_type = #tpu.core_type<tc>, window_params = [{transform_indices = @transform_0, window_bounds = array<i64: 32, 24>}, {pipeline_mode = #tpu.pipeline_mode<synchronous>, transform_indices = @transform_1, window_bounds = array<i64: 24, 128>}, {pipeline_mode = #tpu.pipeline_mode<synchronous>, transform_indices = @transform_2, window_bounds = array<i64: 1, 128>}, {pipeline_mode = #tpu.pipeline_mode<synchronous>, transform_indices = @transform_3, window_bounds = array<i64: 128, 128>}, {pipeline_mode = #tpu.pipeline_mode<synchronous>, transform_indices = @transform_4, window_bounds = array<i64: 1, 128>}, {pipeline_mode = #tpu.pipeline_mode<synchronous>, transform_indices = @transform_5, window_bounds = array<i64: 128, 128>}, {pipeline_mode = #tpu.pipeline_mode<synchronous>, transform_indices = @transform_6, window_bounds = array<i64: 1, 128>}, {transform_indices = @transform_7, window_bounds = array<i64: 32, 128>}]} {
    %c0 = arith.constant 0 : index
    %c0_0 = arith.constant 0 : index
    %0 = vector.load %arg1[%c0, %c0_0] : memref<32x24xf32, #tpu.memory_space<vmem>>, vector<32x24xf32>
    %1 = arith.truncf %0 : vector<32x24xf32> to vector<32x24xbf16>
    %c0_1 = arith.constant 0 : index
    %c0_2 = arith.constant 0 : index
    %2 = vector.load %arg2[%c0_1, %c0_2] : memref<24x128xbf16, #tpu.memory_space<vmem>>, vector<24x128xbf16>
    %cst = arith.constant dense<0.000000e+00> : vector<32x128xf32>
    %3 = tpu.matmul %1, %2, %cst {dimension_numbers = #tpu.dot_dimension_numbers<[1], [0], [0], [1], [0, 0, 1, 1], [], []>} : vector<32x24xbf16>, vector<24x128xbf16>, vector<32x128xf32> -> vector<32x128xf32>
    %c0_3 = arith.constant 0 : index
    %c0_4 = arith.constant 0 : index
    %4 = vector.load %arg3[%c0_3, %c0_4] : memref<1x128xf32, #tpu.memory_space<vmem>>, vector<1x128xf32>
    %5 = vector.broadcast %4 : vector<1x128xf32> to vector<32x128xf32>
    %6 = arith.addf %3, %5 : vector<32x128xf32>
    %cst_5 = arith.constant 0.000000e+00 : f32
    %7 = vector.broadcast %cst_5 : f32 to vector<32x128xf32>
    %8 = arith.maximumf %6, %7 : vector<32x128xf32>
    %9 = arith.truncf %8 : vector<32x128xf32> to vector<32x128xbf16>
    %c0_6 = arith.constant 0 : index
    %c0_7 = arith.constant 0 : index
    %10 = vector.load %arg4[%c0_6, %c0_7] : memref<128x128xbf16, #tpu.memory_space<vmem>>, vector<128x128xbf16>
    %cst_8 = arith.constant dense<0.000000e+00> : vector<32x128xf32>
    %11 = tpu.matmul %9, %10, %cst_8 {dimension_numbers = #tpu.dot_dimension_numbers<[1], [0], [0], [1], [0, 0, 1, 1], [], []>} : vector<32x128xbf16>, vector<128x128xbf16>, vector<32x128xf32> -> vector<32x128xf32>
    %c0_9 = arith.constant 0 : index
    %c0_10 = arith.constant 0 : index
    %12 = vector.load %arg5[%c0_9, %c0_10] : memref<1x128xf32, #tpu.memory_space<vmem>>, vector<1x128xf32>
    %13 = vector.broadcast %12 : vector<1x128xf32> to vector<32x128xf32>
    %14 = arith.addf %11, %13 : vector<32x128xf32>
    %cst_11 = arith.constant 0.000000e+00 : f32
    %15 = vector.broadcast %cst_11 : f32 to vector<32x128xf32>
    %16 = arith.maximumf %14, %15 : vector<32x128xf32>
    %17 = arith.truncf %16 : vector<32x128xf32> to vector<32x128xbf16>
    %c0_12 = arith.constant 0 : index
    %c0_13 = arith.constant 0 : index
    %18 = vector.load %arg6[%c0_12, %c0_13] : memref<128x128xbf16, #tpu.memory_space<vmem>>, vector<128x128xbf16>
    %cst_14 = arith.constant dense<0.000000e+00> : vector<32x128xf32>
    %19 = tpu.matmul %17, %18, %cst_14 {dimension_numbers = #tpu.dot_dimension_numbers<[1], [0], [0], [1], [0, 0, 1, 1], [], []>} : vector<32x128xbf16>, vector<128x128xbf16>, vector<32x128xf32> -> vector<32x128xf32>
    %c0_15 = arith.constant 0 : index
    %c0_16 = arith.constant 0 : index
    %20 = vector.load %arg7[%c0_15, %c0_16] : memref<1x128xf32, #tpu.memory_space<vmem>>, vector<1x128xf32>
    %21 = vector.broadcast %20 : vector<1x128xf32> to vector<32x128xf32>
    %22 = arith.addf %19, %21 : vector<32x128xf32>
    %c0_17 = arith.constant 0 : index
    %c0_18 = arith.constant 0 : index
    %23 = vector.load %arg8[%c0_17, %c0_18] : memref<32x128xf32, #tpu.memory_space<vmem>>, vector<32x128xf32>
    tpu.vector_store %arg8[%c0_17, %c0_18], %22 {strides = array<i32>} : memref<32x128xf32, #tpu.memory_space<vmem>>, vector<32x128xf32>,
    return
  }
  func.func @transform_0(%arg0: i32) -> (i32, i32) {
    %c0_i32 = arith.constant 0 : i32
    %c0_i32_0 = arith.constant 0 : i32
    return %arg0, %c0_i32 : i32, i32
  }
  func.func @transform_1(%arg0: i32) -> (i32, i32) {
    %c0_i32 = arith.constant 0 : i32
    %c0_i32_0 = arith.constant 0 : i32
    %c0_i32_1 = arith.constant 0 : i32
    return %c0_i32, %c0_i32_0 : i32, i32
  }
  func.func @transform_2(%arg0: i32) -> (i32, i32) {
    %c0_i32 = arith.constant 0 : i32
    %c0_i32_0 = arith.constant 0 : i32
    %c0_i32_1 = arith.constant 0 : i32
    return %c0_i32, %c0_i32_0 : i32, i32
  }
  func.func @transform_3(%arg0: i32) -> (i32, i32) {
    %c0_i32 = arith.constant 0 : i32
    %c0_i32_0 = arith.constant 0 : i32
    %c0_i32_1 = arith.constant 0 : i32
    return %c0_i32, %c0_i32_0 : i32, i32
  }
  func.func @transform_4(%arg0: i32) -> (i32, i32) {
    %c0_i32 = arith.constant 0 : i32
    %c0_i32_0 = arith.constant 0 : i32
    %c0_i32_1 = arith.constant 0 : i32
    return %c0_i32, %c0_i32_0 : i32, i32
  }
  func.func @transform_5(%arg0: i32) -> (i32, i32) {
    %c0_i32 = arith.constant 0 : i32
    %c0_i32_0 = arith.constant 0 : i32
    %c0_i32_1 = arith.constant 0 : i32
    return %c0_i32, %c0_i32_0 : i32, i32
  }
  func.func @transform_6(%arg0: i32) -> (i32, i32) {
    %c0_i32 = arith.constant 0 : i32
    %c0_i32_0 = arith.constant 0 : i32
    %c0_i32_1 = arith.constant 0 : i32
    return %c0_i32, %c0_i32_0 : i32, i32
  }
  func.func @transform_7(%arg0: i32) -> (i32, i32) {
    %c0_i32 = arith.constant 0 : i32
    %c0_i32_0 = arith.constant 0 : i32
    return %arg0, %c0_i32 : i32, i32
  }
}

</mosaic_0001>

<llo_original>
// kernel: tpu_custom_call.1
$region0: #{tpu_custom_call.1}
  #allocation0 [shape = 'u32[]', space=smem, size = 0x4, offset = 0x4, fixed_abs, tag = 'smem constant byte address 0x4 - core index']
  #allocation1 [shape = 'u32[144,128]{1,0:T(1,128)}', space=vmem, size = 0x12000, scoped, tag = 'internal scratch']
  %s0 = inlined_call_operand.vmem [shape: f32[32,24], index: 0, kind: input, shape index: {}]
  %s1 = inlined_call_operand.hbm [shape: bf16[24,128], index: 1, kind: input, shape index: {}]
  %s2 = inlined_call_operand.vmem [shape: f32[1,128], index: 2, kind: input, shape index: {}]
  %s3 = inlined_call_operand.vmem [shape: bf16[128,128], index: 3, kind: input, shape index: {}]
  %s4 = inlined_call_operand.vmem [shape: f32[1,128], index: 4, kind: input, shape index: {}]
  %s5 = inlined_call_operand.hbm [shape: bf16[128,128], index: 5, kind: input, shape index: {}]
  %s6 = inlined_call_operand.vmem [shape: f32[1,128], index: 6, kind: input, shape index: {}]
  %s7 = inlined_call_operand.hbm [shape: f32[32,128], index: 7, kind: output, shape index: {}]
  %s8 = sld [smem:[#allocation0]]
  $region46: #{tpu_custom_call.1} parent=0
    _
  %s10 = ssub.s32 1, %s8
  %s11 = scalar_select 0, %s10, %s8
  $region1: #{tpu_custom_call.1} parent=0
    #allocation2 [shape = 'u8[6144]{0}', space=vmem, size = 0x1800, scoped, tag = 'input window, operand 1, single buffered']
    #allocation3 [shape = 's32[1]{0}', space=sflag, size = 0x4, scoped, tag = 'scoped memory for tpu_custom_call.1']
    #allocation4 [shape = 's32[1]{0}', space=sflag, size = 0x4, scoped, tag = 'scoped memory for tpu_custom_call.1']
    #allocation5 [shape = 'u8[32768]{0}', space=vmem, size = 0x8000, scoped, tag = 'input window, operand 5, single buffered']
    #allocation6 [shape = 's32[1]{0}', space=sflag, size = 0x4, scoped, tag = 'scoped memory for tpu_custom_call.1']
    #allocation7 [shape = 'u8[16384]{0}', space=vmem, size = 0x4000, scoped, tag = 'output window, operand 0, single buffered']
    %12 = vsyncpa [#allocation3], 0
    %13 = vsyncpa [#allocation6], 0
    %14 = vsyncpa [#allocation4], 0
    // Predicated region
    $region2: #{tpu_custom_call.1} parent=1 // pred_check
      _
    $region3: #{tpu_custom_call.1} parent=1 // pred_check_branch
      %16 = sbr.rel (0) target = $region5
    $region4: #{tpu_custom_call.1} parent=1 // pred_region
      _
    $region5: #{tpu_custom_call.1} parent=1 // pred_fallthru
      _
    // Predicated region
    $region6: #{tpu_custom_call.1} parent=1 // pred_check
      _
    $region7: #{tpu_custom_call.1} parent=1 // pred_check_branch
      %18 = sbr.rel (0) target = $region9
    $region8: #{tpu_custom_call.1} parent=1 // pred_region
      %s20 = ssub.s32 192, 192
      %21 = vsyncadd [#allocation3], %s20
      %s22 = sshll.u32 [#allocation2], 4
      %s23 = int_to_ptr.vmem [resolvable:$true] %s22
      %28 = dma.hbm_to_vmem [thread:$0]  %s1, 192, %s23, [#allocation3], 64, 64, 4
    $region9: #{tpu_custom_call.1} parent=1 // pred_fallthru
      _
    // Predicated region
    $region10: #{tpu_custom_call.1} parent=1 // pred_check
      _
    $region11: #{tpu_custom_call.1} parent=1 // pred_check_branch
      %30 = sbr.rel (0) target = $region13
    $region12: #{tpu_custom_call.1} parent=1 // pred_region
      _
    $region13: #{tpu_custom_call.1} parent=1 // pred_fallthru
      _
    // Predicated region
    $region14: #{tpu_custom_call.1} parent=1 // pred_check
      _
    $region15: #{tpu_custom_call.1} parent=1 // pred_check_branch
      %32 = sbr.rel (0) target = $region17
    $region16: #{tpu_custom_call.1} parent=1 // pred_region
      _
    $region17: #{tpu_custom_call.1} parent=1 // pred_fallthru
      _
    // Predicated region
    $region18: #{tpu_custom_call.1} parent=1 // pred_check
      _
    $region19: #{tpu_custom_call.1} parent=1 // pred_check_branch
      %34 = sbr.rel (0) target = $region21
    $region20: #{tpu_custom_call.1} parent=1 // pred_region
      _
    $region21: #{tpu_custom_call.1} parent=1 // pred_fallthru
      _
    // Predicated region
    $region22: #{tpu_custom_call.1} parent=1 // pred_check
      _
    $region23: #{tpu_custom_call.1} parent=1 // pred_check_branch
      %36 = sbr.rel (0) target = $region25
    $region24: #{tpu_custom_call.1} parent=1 // pred_region
      %s38 = ssub.s32 1024, 1024
      %39 = vsyncadd [#allocation6], %s38
      %s40 = sshll.u32 [#allocation5], 4
      %s41 = int_to_ptr.vmem [resolvable:$true] %s40
      %46 = dma.hbm_to_vmem [thread:$0]  %s5, 1024, %s41, [#allocation6], 64, 64, 4
    $region25: #{tpu_custom_call.1} parent=1 // pred_fallthru
      _
    // Predicated region
    $region26: #{tpu_custom_call.1} parent=1 // pred_check
      _
    $region27: #{tpu_custom_call.1} parent=1 // pred_check_branch
      %48 = sbr.rel (0) target = $region29
    $region28: #{tpu_custom_call.1} parent=1 // pred_region
      _
    $region29: #{tpu_custom_call.1} parent=1 // pred_fallthru
      _
    // Predicated region
    $region30: #{tpu_custom_call.1} parent=1 // pred_check
      _
    $region31: #{tpu_custom_call.1} parent=1 // pred_check_branch
      %50 = sbr.rel (0) target = $region33
    $region32: #{tpu_custom_call.1} parent=1 // pred_region
      %51 = dma.done [#allocation3], 192
    $region33: #{tpu_custom_call.1} parent=1 // pred_fallthru
      _
    // Predicated region
    $region34: #{tpu_custom_call.1} parent=1 // pred_check
      _
    $region35: #{tpu_custom_call.1} parent=1 // pred_check_branch
      %53 = sbr.rel (0) target = $region37
    $region36: #{tpu_custom_call.1} parent=1 // pred_region
      %54 = dma.done [#allocation6], 1024
    $region37: #{tpu_custom_call.1} parent=1 // pred_fallthru
      _
    %v56 = vld [vmem:[%s0] sm:$0xff]
    %v57 = vld [vmem:[%s0 + $0x8] sm:$0xff]
    %v58 = vld [vmem:[%s0 + $0x10] sm:$0xff]
    %v59 = vld [vmem:[%s0 + $0x18] sm:$0xff]
    %v60 = vpack.c.bf16 %v57, %v56
    %v61 = vpack.c.bf16 %v59, %v58
    %v62 = vld [vmem:[#allocation2] sm:$0xf]
    %v63 = vld [vmem:[#allocation2 + $0x4] sm:$0xf]
    %v64 = vld [vmem:[#allocation2 + $0x8] sm:$0xf]
    %v65 = vld [vmem:[%s2] sm:$0x1]
    %v67 = vlaneseq
    %v68 = vshrl.u32 %v67, 7
    %v69 = vsub.s32 0, %v68
    %v70 = vrot.slane %v65, %v69
    %v75 = vunpack.c.l.b16 %v62
    %v76 = vunpack.c.l.b16 %v63
    %v77 = vunpack.c.l.b16 %v64
    %v78 = vpack.c.b16 %v76, %v75
    %v79 = vpack.c.b16 %v77, %v77
    %vm81 = vcmask 195584
    %v83 = vsel %vm81, %v60, 0
    %v86 = vsel %vm81, %v61, 0
    %vm88 = vcmask 1043456
    %v90 = vsel %vm88, %v79, 0
    %92 = vmatprep.subr.bf16.mxu0 0
    %93 = vmatpush1.bf16.msra.mxu0 %v78
    %94 = vmatprep.subr.bf16.mxu0 0
    %95 = vmatpush1.bf16.msra.mxu0 %v90
    %96 = vmatprep.subr.bf16.mxu0 0
    %97 = vmatpush1.bf16.msra.mxu0 0
    %98 = vmatprep.subr.bf16.mxu0 0
    %99 = vmatpush1.bf16.msra.mxu0 0
    %100 = vmatprep.subr.bf16.mxu0 0
    %101 = vmatpush1.bf16.msra.mxu0 0
    %102 = vmatprep.subr.bf16.mxu0 0
    %103 = vmatpush1.bf16.msra.mxu0 0
    %104 = vmatprep.subr.bf16.mxu0 0
    %105 = vmatpush1.bf16.msra.mxu0 0
    %106 = vmatprep.subr.bf16.mxu0 0
    %107 = vmatpush1.bf16.msra.mxu0 0
    %108 = vmatprep.subr.bf16.mxu0 0
    %109 = vmatpush1.bf16.msra.mxu0 0
    %110 = vmatprep.subr.bf16.mxu0 0
    %111 = vmatpush1.bf16.msra.mxu0 0
    %112 = vmatprep.subr.bf16.mxu0 0
    %113 = vmatpush1.bf16.msra.mxu0 0
    %114 = vmatprep.subr.bf16.mxu0 0
    %115 = vmatpush1.bf16.msra.mxu0 0
    %116 = vmatprep.subr.bf16.mxu0 0
    %117 = vmatpush1.bf16.msra.mxu0 0
    %118 = vmatprep.subr.bf16.mxu0 0
    %119 = vmatpush1.bf16.msra.mxu0 0
    %120 = vmatprep.subr.bf16.mxu0 0
    %121 = vmatpush1.bf16.msra.mxu0 0
    %122 = vmatprep.subr.bf16.mxu0 0
    %123 = vmatpush1.bf16.msra.mxu0 0
    %124 = vmatprep.mubr.bf16.mxu0 0
    %125 = vmatmul.mubr.bf16.gmra.mrb[0].mxu0 %v83
    %v126 = vpop.f32.mrb[0].mxu0
    %v127 = vadd.f32 %v70, %v126
    %v128 = vpop.f32.mrb[0].mxu0
    %v129 = vpop.f32.mrb[0].mxu0
    %v130 = vadd.f32 %v70, %v129
    %v131 = vpop.f32.mrb[0].mxu0
    %132 = vmatprep.mubr.bf16.mxu0 0
    %133 = vmatmul.mubr.bf16.gmra.mrb[0].mxu0 %v86
    %v134 = vpop.f32.mrb[0].mxu0
    %v135 = vadd.f32 %v70, %v134
    %v136 = vpop.f32.mrb[0].mxu0
    %v137 = vpop.f32.mrb[0].mxu0
    %v138 = vadd.f32 %v70, %v137
    %v139 = vpop.f32.mrb[0].mxu0
    %140 = vdwg.mxu0
    %v141 = vmax.f32 %v127, 0.0
    %v142 = vmax.f32 %v130, 0.0
    %v143 = vmax.f32 %v135, 0.0
    %v144 = vmax.f32 %v138, 0.0
    %v145 = vpack.c.bf16 %v142, %v141
    %v146 = vpack.c.bf16 %v144, %v143
    %v147 = vld [vmem:[%s3] sm:$0xf]
    %v148 = vld [vmem:[%s3 + $0x4] sm:$0xf]
    %v149 = vld [vmem:[%s3 + $0x8] sm:$0xf]
    %v150 = vld [vmem:[%s3 + $0xc] sm:$0xf]
    %v151 = vld [vmem:[%s3 + $0x10] sm:$0xf]
    %v152 = vld [vmem:[%s3 + $0x14] sm:$0xf]
    %v153 = vld [vmem:[%s3 + $0x18] sm:$0xf]
    %v154 = vld [vmem:[%s3 + $0x1c] sm:$0xf]
    %v155 = vld [vmem:[%s3 + $0x20] sm:$0xf]
    %v156 = vld [vmem:[%s3 + $0x24] sm:$0xf]
    %v157 = vld [vmem:[%s3 + $0x28] sm:$0xf]
    %v158 = vld [vmem:[%s3 + $0x2c] sm:$0xf]
    %v159 = vld [vmem:[%s3 + $0x30] sm:$0xf]
    %v160 = vld [vmem:[%s3 + $0x34] sm:$0xf]
    %v161 = vld [vmem:[%s3 + $0x38] sm:$0xf]
    %v162 = vld [vmem:[%s3 + $0x3c] sm:$0xf]
    %v163 = vld [vmem:[%s4] sm:$0x1]
    %v165 = vlaneseq
    %v166 = vshrl.u32 %v165, 7
    %v167 = vsub.s32 0, %v166
    %v168 = vrot.slane %v163, %v167
    %v186 = vunpack.c.l.b16 %v147
    %v187 = vunpack.c.l.b16 %v148
    %v188 = vunpack.c.l.b16 %v149
    %v189 = vunpack.c.l.b16 %v150
    %v190 = vunpack.c.l.b16 %v151
    %v191 = vunpack.c.l.b16 %v152
    %v192 = vunpack.c.l.b16 %v153
    %v193 = vunpack.c.l.b16 %v154
    %v194 = vunpack.c.l.b16 %v155
    %v195 = vunpack.c.l.b16 %v156
    %v196 = vunpack.c.l.b16 %v157
    %v197 = vunpack.c.l.b16 %v158
    %v198 = vunpack.c.l.b16 %v159
    %v199 = vunpack.c.l.b16 %v160
    %v200 = vunpack.c.l.b16 %v161
    %v201 = vunpack.c.l.b16 %v162
    %v202 = vpack.c.b16 %v187, %v186
    %v203 = vpack.c.b16 %v189, %v188
    %v204 = vpack.c.b16 %v191, %v190
    %v205 = vpack.c.b16 %v193, %v192
    %v206 = vpack.c.b16 %v195, %v194
    %v207 = vpack.c.b16 %v197, %v196
    %v208 = vpack.c.b16 %v199, %v198
    %v209 = vpack.c.b16 %v201, %v200
    %218 = vmatprep.subr.bf16.mxu0 0
    %219 = vmatpush1.bf16.msra.mxu0 %v202
    %220 = vmatprep.subr.bf16.mxu0 0
    %221 = vmatpush1.bf16.msra.mxu0 %v203
    %222 = vmatprep.subr.bf16.mxu0 0
    %223 = vmatpush1.bf16.msra.mxu0 %v204
    %224 = vmatprep.subr.bf16.mxu0 0
    %225 = vmatpush1.bf16.msra.mxu0 %v205
    %226 = vmatprep.subr.bf16.mxu0 0
    %227 = vmatpush1.bf16.msra.mxu0 %v206
    %228 = vmatprep.subr.bf16.mxu0 0
    %229 = vmatpush1.bf16.msra.mxu0 %v207
    %230 = vmatprep.subr.bf16.mxu0 0
    %231 = vmatpush1.bf16.msra.mxu0 %v208
    %232 = vmatprep.subr.bf16.mxu0 0
    %233 = vmatpush1.bf16.msra.mxu0 %v209
    %234 = vmatprep.subr.bf16.mxu0 0
    %235 = vmatpush1.bf16.msra.mxu0 0
    %236 = vmatprep.subr.bf16.mxu0 0
    %237 = vmatpush1.bf16.msra.mxu0 0
    %238 = vmatprep.subr.bf16.mxu0 0
    %239 = vmatpush1.bf16.msra.mxu0 0
    %240 = vmatprep.subr.bf16.mxu0 0
    %241 = vmatpush1.bf16.msra.mxu0 0
    %242 = vmatprep.subr.bf16.mxu0 0
    %243 = vmatpush1.bf16.msra.mxu0 0
    %244 = vmatprep.subr.bf16.mxu0 0
    %245 = vmatpush1.bf16.msra.mxu0 0
    %246 = vmatprep.subr.bf16.mxu0 0
    %247 = vmatpush1.bf16.msra.mxu0 0
    %248 = vmatprep.subr.bf16.mxu0 0
    %249 = vmatpush1.bf16.msra.mxu0 0
    %250 = vmatprep.mubr.bf16.mxu0 0
    %251 = vmatmul.mubr.bf16.gmra.mrb[0].mxu0 %v145
    %v252 = vpop.f32.mrb[0].mxu0
    %v253 = vadd.f32 %v168, %v252
    %v254 = vpop.f32.mrb[0].mxu0
    %v255 = vpop.f32.mrb[0].mxu0
    %v256 = vadd.f32 %v168, %v255
    %v257 = vpop.f32.mrb[0].mxu0
    %258 = vmatprep.mubr.bf16.mxu0 0
    %259 = vmatmul.mubr.bf16.gmra.mrb[0].mxu0 %v146
    %v260 = vpop.f32.mrb[0].mxu0
    %v261 = vadd.f32 %v168, %v260
    %v262 = vpop.f32.mrb[0].mxu0
    %v263 = vpop.f32.mrb[0].mxu0
    %v264 = vadd.f32 %v168, %v263
    %v265 = vpop.f32.mrb[0].mxu0
    %266 = vdwg.mxu0
    %v267 = vmax.f32 %v253, 0.0
    %v268 = vmax.f32 %v256, 0.0
    %v269 = vmax.f32 %v261, 0.0
    %v270 = vmax.f32 %v264, 0.0
    %v271 = vpack.c.bf16 %v268, %v267
    %v272 = vpack.c.bf16 %v270, %v269
    %v273 = vld [vmem:[#allocation5] sm:$0xf]
    %v274 = vld [vmem:[#allocation5 + $0x4] sm:$0xf]
    %v275 = vld [vmem:[#allocation5 + $0x8] sm:$0xf]
    %v276 = vld [vmem:[#allocation5 + $0xc] sm:$0xf]
    %v277 = vld [vmem:[#allocation5 + $0x10] sm:$0xf]
    %v278 = vld [vmem:[#allocation5 + $0x14] sm:$0xf]
    %v279 = vld [vmem:[#allocation5 + $0x18] sm:$0xf]
    %v280 = vld [vmem:[#allocation5 + $0x1c] sm:$0xf]
    %v281 = vld [vmem:[#allocation5 + $0x20] sm:$0xf]
    %v282 = vld [vmem:[#allocation5 + $0x24] sm:$0xf]
    %v283 = vld [vmem:[#allocation5 + $0x28] sm:$0xf]
    %v284 = vld [vmem:[#allocation5 + $0x2c] sm:$0xf]
    %v285 = vld [vmem:[#allocation5 + $0x30] sm:$0xf]
    %v286 = vld [vmem:[#allocation5 + $0x34] sm:$0xf]
    %v287 = vld [vmem:[#allocation5 + $0x38] sm:$0xf]
    %v288 = vld [vmem:[#allocation5 + $0x3c] sm:$0xf]
    %v289 = vld [vmem:[%s6] sm:$0x1]
    %v291 = vlaneseq
    %v292 = vshrl.u32 %v291, 7
    %v293 = vsub.s32 0, %v292
    %v294 = vrot.slane %v289, %v293
    %v312 = vunpack.c.l.b16 %v273
    %v313 = vunpack.c.l.b16 %v274
    %v314 = vunpack.c.l.b16 %v275
    %v315 = vunpack.c.l.b16 %v276
    %v316 = vunpack.c.l.b16 %v277
    %v317 = vunpack.c.l.b16 %v278
    %v318 = vunpack.c.l.b16 %v279
    %v319 = vunpack.c.l.b16 %v280
    %v320 = vunpack.c.l.b16 %v281
    %v321 = vunpack.c.l.b16 %v282
    %v322 = vunpack.c.l.b16 %v283
    %v323 = vunpack.c.l.b16 %v284
    %v324 = vunpack.c.l.b16 %v285
    %v325 = vunpack.c.l.b16 %v286
    %v326 = vunpack.c.l.b16 %v287
    %v327 = vunpack.c.l.b16 %v288
    %v328 = vpack.c.b16 %v313, %v312
    %v329 = vpack.c.b16 %v315, %v314
    %v330 = vpack.c.b16 %v317, %v316
    %v331 = vpack.c.b16 %v319, %v318
    %v332 = vpack.c.b16 %v321, %v320
    %v333 = vpack.c.b16 %v323, %v322
    %v334 = vpack.c.b16 %v325, %v324
    %v335 = vpack.c.b16 %v327, %v326
    %344 = vmatprep.subr.bf16.mxu0 0
    %345 = vmatpush1.bf16.msra.mxu0 %v328
    %346 = vmatprep.subr.bf16.mxu0 0
    %347 = vmatpush1.bf16.msra.mxu0 %v329
    %348 = vmatprep.subr.bf16.mxu0 0
    %349 = vmatpush1.bf16.msra.mxu0 %v330
    %350 = vmatprep.subr.bf16.mxu0 0
    %351 = vmatpush1.bf16.msra.mxu0 %v331
    %352 = vmatprep.subr.bf16.mxu0 0
    %353 = vmatpush1.bf16.msra.mxu0 %v332
    %354 = vmatprep.subr.bf16.mxu0 0
    %355 = vmatpush1.bf16.msra.mxu0 %v333
    %356 = vmatprep.subr.bf16.mxu0 0
    %357 = vmatpush1.bf16.msra.mxu0 %v334
    %358 = vmatprep.subr.bf16.mxu0 0
    %359 = vmatpush1.bf16.msra.mxu0 %v335
    %360 = vmatprep.subr.bf16.mxu0 0
    %361 = vmatpush1.bf16.msra.mxu0 0
    %362 = vmatprep.subr.bf16.mxu0 0
    %363 = vmatpush1.bf16.msra.mxu0 0
    %364 = vmatprep.subr.bf16.mxu0 0
    %365 = vmatpush1.bf16.msra.mxu0 0
    %366 = vmatprep.subr.bf16.mxu0 0
    %367 = vmatpush1.bf16.msra.mxu0 0
    %368 = vmatprep.subr.bf16.mxu0 0
    %369 = vmatpush1.bf16.msra.mxu0 0
    %370 = vmatprep.subr.bf16.mxu0 0
    %371 = vmatpush1.bf16.msra.mxu0 0
    %372 = vmatprep.subr.bf16.mxu0 0
    %373 = vmatpush1.bf16.msra.mxu0 0
    %374 = vmatprep.subr.bf16.mxu0 0
    %375 = vmatpush1.bf16.msra.mxu0 0
    %376 = vmatprep.mubr.bf16.mxu0 0
    %377 = vmatmul.mubr.bf16.gmra.mrb[0].mxu0 %v271
    %v378 = vpop.f32.mrb[0].mxu0
    %v379 = vadd.f32 %v294, %v378
    %v380 = vpop.f32.mrb[0].mxu0
    %v381 = vpop.f32.mrb[0].mxu0
    %v382 = vadd.f32 %v294, %v381
    %v383 = vpop.f32.mrb[0].mxu0
    %384 = vmatprep.mubr.bf16.mxu0 0
    %385 = vmatmul.mubr.bf16.gmra.mrb[0].mxu0 %v272
    %v386 = vpop.f32.mrb[0].mxu0
    %v387 = vadd.f32 %v294, %v386
    %v388 = vpop.f32.mrb[0].mxu0
    %v389 = vpop.f32.mrb[0].mxu0
    %v390 = vadd.f32 %v294, %v389
    %v391 = vpop.f32.mrb[0].mxu0
    %392 = vdwg.mxu0
    %393 = vst [vmem:[#allocation7] sm:$0xff] %v379
    %394 = vst [vmem:[#allocation7 + $0x8] sm:$0xff] %v382
    %395 = vst [vmem:[#allocation7 + $0x10] sm:$0xff] %v387
    %396 = vst [vmem:[#allocation7 + $0x18] sm:$0xff] %v390
    // Predicated region
    $region38: #{tpu_custom_call.1} parent=1 // pred_check
      _
    $region39: #{tpu_custom_call.1} parent=1 // pred_check_branch
      %398 = sbr.rel (0) target = $region41
    $region40: #{tpu_custom_call.1} parent=1 // pred_region
      %s400 = ssub.s32 512, 512
      %401 = vsyncadd [#allocation4], %s400
      %s402 = sshll.u32 [#allocation7], 4
      %s403 = int_to_ptr.vmem [resolvable:$true] %s402
      %408 = dma.vmem_to_hbm [thread:$0]  %s403, 512, %s7, [#allocation4], 128, 128, 8
    $region41: #{tpu_custom_call.1} parent=1 // pred_fallthru
      _
    // Predicated region
    $region42: #{tpu_custom_call.1} parent=1 // pred_check
      _
    $region43: #{tpu_custom_call.1} parent=1 // pred_check_branch
      %410 = sbr.rel (0) target = $region45
    $region44: #{tpu_custom_call.1} parent=1 // pred_region
      %411 = dma.done [#allocation4], 512
    $region45: #{tpu_custom_call.1} parent=1 // pred_fallthru
      _
    %412 = vsyncpa [#allocation3], 1
    %413 = vsyncpa [#allocation6], 1
    %414 = vsyncpa [#allocation4], 1

</llo_original>
